<compile_context>
chip_gen: v7x
topology: tpu7x:2x2x1
jax: 0.10.0
libtpu: 0.0.40
codegen_flags: <defaults>
</compile_context>

<pallas_src>
import functools

import jax
import jax.numpy as jnp
from jax.experimental import pallas as pl
from jax.experimental.pallas import tpu as pltpu


# ---------------------------------------------------------------------------
# Packed-slab layout (rows x 128 lanes):
#   [  0:128)  W1     (padded [input_dim,15] -> [128,128])
#   [128:256)  W_ab1  ([15,50] fused lin1; row 127 = b_ab1, [127,127]=1)
#   [256:384)  W_ab2  ([50,20] block-diag lin2; row 127 = b_ab2, [127,127]=1)
#   [384:512)  W_out  ([20,out]; row 127 = b_out)
#   [512:520)  b1 block (row 0 = b1, lane 127 = 1.0 "bias lane" injector)
# ---------------------------------------------------------------------------
SLAB_ROWS = 4 * 128 + 8  # 520


def _round_up(v, m):
    return ((v + m - 1) // m) * m


def _bifurcation_kernel(x_ref, slab_ref, o_ref, *, din_k):
    cdt = slab_ref.dtype
    x = x_ref[...]

    w1 = slab_ref[0:din_k, :]
    w_ab1 = slab_ref[128:256, :]
    w_ab2 = slab_ref[256:384, :]
    w_out = slab_ref[384:512, :]
    b1 = slab_ref[512:513, :]

    # Layer 1: relu(X @ W1 + b1). b1 lane 127 is 1.0 so h1[:,127] == 1 after
    # relu, which lets layers 2-4 carry their biases in weight row 127.
    h1 = jnp.maximum(
        jnp.dot(x, w1, preferred_element_type=jnp.float32)
        + b1.astype(jnp.float32),
        0.0,
    ).astype(cdt)

    # Fused (lin2-folded) branch first layers; bias folded via the 1-lane.
    z = jnp.maximum(
        jnp.dot(h1, w_ab1, preferred_element_type=jnp.float32), 0.0
    ).astype(cdt)

    # Block-diagonal branch second layers: lanes 0..9 = a, 10..19 = b.
    cat = jnp.maximum(
        jnp.dot(z, w_ab2, preferred_element_type=jnp.float32), 0.0
    ).astype(cdt)

    # Final Linear(20, output_dim); bias folded; padded output lanes stay 0.
    out = jnp.dot(cat, w_out, preferred_element_type=jnp.float32)
    o_ref[...] = out.astype(o_ref.dtype)


def pack_params(params, dtype=jnp.float32):
    """Fold lin2 + biases, fuse branches A/B, and pack into one padded slab."""
    f32 = jnp.float32
    w1, b1 = params["w1"].astype(f32), params["b1"].astype(f32)
    assert w1.shape[0] <= 128, "pack_params assumes input_dim <= 128"

    w2, b2 = params["w2"], params["b2"]

    # Fold the activation-free outer lin2 into each inner branch's first layer.
    w2a = w2 @ params["wa1"]
    b2a = b2 @ params["wa1"] + params["ba1"]
    w2b = w2 @ params["wb1"]
    b2b = b2 @ params["wb1"] + params["bb1"]

    # Fuse branches along the output (lane) axis.
    w_ab1 = jnp.concatenate([w2a, w2b], axis=1)  # [15,50]
    b_ab1 = jnp.concatenate([b2a, b2b], axis=1)  # [1,50]

    # Block-diagonal second branch layer -> output is cat([a,b]) in lanes 0..19.
    w_ab2 = jnp.zeros((50, 20), f32)
    w_ab2 = w_ab2.at[0:25, 0:10].set(params["wa2"])
    w_ab2 = w_ab2.at[25:50, 10:20].set(params["wb2"])
    b_ab2 = jnp.concatenate([params["ba2"], params["bb2"]], axis=1)  # [1,20]

    w_out, b_out = params["wout"], params["bout"]

    def pad_w(w, bias=None, carry_one=False):
        blk = jnp.zeros((128, 128), f32).at[: w.shape[0], : w.shape[1]].set(w)
        if bias is not None:
            blk = blk.at[127, : bias.shape[1]].set(bias[0])  # bias in row 127
        if carry_one:
            blk = blk.at[127, 127].set(1.0)  # keep the constant-1 lane alive
        return blk

    # Layer-1 bias block: real b1 plus the 1.0 injector on lane 127.
    b1_blk = (
        jnp.zeros((8, 128), f32)
        .at[0, : b1.shape[1]].set(b1[0])
        .at[0, 127].set(1.0)
    )

    slab = jnp.concatenate(
        [
            pad_w(w1),
            pad_w(w_ab1, bias=b_ab1, carry_one=True),
            pad_w(w_ab2, bias=b_ab2, carry_one=True),
            pad_w(w_out, bias=b_out, carry_one=False),
            b1_blk,
        ],
        axis=0,
    )
    assert slab.shape == (SLAB_ROWS, 128)
    return slab.astype(dtype)


def bifurcation_outer_forward(x, slab, output_dim):
    """x: [B, input_dim], slab: packed params. Returns [B, output_dim] f32."""
    B, din = x.shape
    assert din <= 128
    cdt = slab.dtype
    din_k = _round_up(din, 8)

    # Batch padded only to a multiple of 8; ragged last grid block is masked.
    b_pad = _round_up(max(B, 8), 8)
    cap = 1024  # ~4 MiB footprint at this tile -> fits v5e's 16 MiB default
    tb = min(cap, b_pad)
    if b_pad >= 32 and tb == b_pad:
        # v7x: keep >=2 grid steps on the "parallel" axis so both TCs get work.
        tb = _round_up(pl.cdiv(b_pad, 2), 16)
    grid = (pl.cdiv(b_pad, tb),)

    xk = x.astype(cdt)
    if (b_pad, din_k) != (B, din):
        xk = jnp.zeros((b_pad, din_k), cdt).at[:B, :din].set(xk)

    out_padded = pl.pallas_call(
        functools.partial(_bifurcation_kernel, din_k=din_k),
        out_shape=jax.ShapeDtypeStruct((b_pad, 128), jnp.float32),
        grid_spec=pltpu.PrefetchScalarGridSpec(
            num_scalar_prefetch=0,
            grid=grid,
            in_specs=[
                # x tile: full (unpadded-to-128) feature dim in lanes.
                pl.BlockSpec((tb, din_k), lambda i: (i, 0)),
                # Parameter slab: constant index_map -> resident across steps.
                # (pipeline_mode=pl.Buffered(1) would save one 260 KiB buffer;
                #  skipped as negligible.)
                pl.BlockSpec((SLAB_ROWS, 128), lambda i: (0, 0)),
            ],
            out_specs=pl.BlockSpec((tb, 128), lambda i: (i, 0)),
        ),
        compiler_params=pltpu.CompilerParams(
            dimension_semantics=("parallel",),
        ),
    )(xk, slab)

    return out_padded[:B, :output_dim]


def make_params(key, input_dim, output_dim):
    """Deterministic init. Weights stored as [in, out]; biases as [1, out]."""

    def lin(k, fan_in, fan_out):
        kw, kb = jax.random.split(k)
        w = jax.random.normal(kw, (fan_in, fan_out), jnp.float32) * 0.1
        b = jax.random.normal(kb, (1, fan_out), jnp.float32) * 0.1
        return w, b

    keys = jax.random.split(key, 7)
    w1, b1 = lin(keys[0], input_dim, 15)       # outer lin1
    w2, b2 = lin(keys[1], 15, 25)              # outer lin2
    wa1, ba1 = lin(keys[2], 25, 25)            # inner A lin1
    wa2, ba2 = lin(keys[3], 25, 10)            # inner A lin2
    wb1, bb1 = lin(keys[4], 25, 25)            # inner B lin1
    wb2, bb2 = lin(keys[5], 25, 10)            # inner B lin2
    wout, bout = lin(keys[6], 20, output_dim)  # outer params_b

    return {
        "w1": w1, "b1": b1, "w2": w2, "b2": b2,
        "wa1": wa1, "ba1": ba1, "wa2": wa2, "ba2": ba2,
        "wb1": wb1, "bb1": bb1, "wb2": wb2, "bb2": bb2,
        "wout": wout, "bout": bout,
    }


def reference_forward(x, params):
    """Pure-JAX reference matching the original (unfused) PyTorch forward."""
    relu = lambda v: jnp.maximum(v, 0.0)
    h1 = relu(x @ params["w1"] + params["b1"])
    h2 = h1 @ params["w2"] + params["b2"]
    a = relu(relu(h2 @ params["wa1"] + params["ba1"]) @ params["wa2"] + params["ba2"])
    b = relu(relu(h2 @ params["wb1"] + params["bb1"]) @ params["wb2"] + params["bb2"])
    cat = jnp.concatenate([a, b], axis=-1)
    return cat @ params["wout"] + params["bout"]


if __name__ == "__main__":
    input_dim = 32
    output_dim = 8
    batch = 8

    key = jax.random.PRNGKey(0)
    kx, kp = jax.random.split(key)
    x = jax.random.normal(kx, (batch, input_dim), jnp.float32)
    params = make_params(kp, input_dim, output_dim)

    ref = reference_forward(x, params)

    # f32 path (default): exact parity with the PyTorch-equivalent reference.
    slab_f32 = pack_params(params, dtype=jnp.float32)
    out = jax.block_until_ready(bifurcation_outer_forward(x, slab_f32, output_dim))
    assert out.shape == (batch, output_dim), out.shape
    assert jnp.allclose(out, ref, atol=1e-4, rtol=1e-4), float(
        jnp.max(jnp.abs(out - ref))
    )

    # bf16 MXU path (f32 accumulation): looser tolerance by construction.
    slab_bf16 = pack_params(params, dtype=jnp.bfloat16)
    out_bf = jax.block_until_ready(bifurcation_outer_forward(x, slab_bf16, output_dim))
    assert out_bf.shape == (batch, output_dim), out_bf.shape
    assert jnp.allclose(out_bf, ref, atol=3e-2, rtol=3e-2), float(
        jnp.max(jnp.abs(out_bf - ref))
    )

    print("KERNEL_OK")
</pallas_src>

<mosaic_0001>
module attributes {stable_mosaic.version = 11 : i64} {
  func.func @_bifurcation_kernel(%arg0: i32, %arg1: memref<8x32xf32, #tpu.memory_space<vmem>>, %arg2: memref<520x128xf32, #tpu.memory_space<vmem>>, %arg3: memref<8x128xf32, #tpu.memory_space<vmem>>) attributes {dimension_semantics = [#tpu.dimension_semantics<parallel>], iteration_bounds = array<i64: 1>, scalar_prefetch = 0 : i64, scratch_operands = 0 : i64, tpu.core_type = #tpu.core_type<tc>, window_params = [{transform_indices = @transform_0, window_bounds = array<i64: 8, 32>}, {pipeline_mode = #tpu.pipeline_mode<synchronous>, transform_indices = @transform_1, window_bounds = array<i64: 520, 128>}, {transform_indices = @transform_2, window_bounds = array<i64: 8, 128>}]} {
    %c0 = arith.constant 0 : index
    %c0_0 = arith.constant 0 : index
    %0 = vector.load %arg1[%c0, %c0_0] : memref<8x32xf32, #tpu.memory_space<vmem>>, vector<8x32xf32>
    %c0_1 = arith.constant 0 : index
    %c0_2 = arith.constant 0 : index
    %1 = vector.load %arg2[%c0_1, %c0_2] : memref<520x128xf32, #tpu.memory_space<vmem>>, vector<32x128xf32>
    %c128 = arith.constant 128 : index
    %c0_3 = arith.constant 0 : index
    %2 = vector.load %arg2[%c128, %c0_3] : memref<520x128xf32, #tpu.memory_space<vmem>>, vector<128x128xf32>
    %c256 = arith.constant 256 : index
    %c0_4 = arith.constant 0 : index
    %3 = vector.load %arg2[%c256, %c0_4] : memref<520x128xf32, #tpu.memory_space<vmem>>, vector<128x128xf32>
    %c384 = arith.constant 384 : index
    %c0_5 = arith.constant 0 : index
    %4 = vector.load %arg2[%c384, %c0_5] : memref<520x128xf32, #tpu.memory_space<vmem>>, vector<128x128xf32>
    %c512 = arith.constant 512 : index
    %c0_6 = arith.constant 0 : index
    %5 = vector.load %arg2[%c512, %c0_6] : memref<520x128xf32, #tpu.memory_space<vmem>>, vector<1x128xf32>
    %cst = arith.constant dense<0.000000e+00> : vector<8x128xf32>
    %6 = tpu.matmul %0, %1, %cst {dimension_numbers = #tpu.dot_dimension_numbers<[1], [0], [0], [1], [0, 0, 1, 1], [], []>} : vector<8x32xf32>, vector<32x128xf32>, vector<8x128xf32> -> vector<8x128xf32>
    %7 = vector.broadcast %5 : vector<1x128xf32> to vector<8x128xf32>
    %8 = arith.addf %6, %7 : vector<8x128xf32>
    %cst_7 = arith.constant 0.000000e+00 : f32
    %9 = vector.broadcast %cst_7 : f32 to vector<8x128xf32>
    %10 = arith.maximumf %8, %9 : vector<8x128xf32>
    %cst_8 = arith.constant dense<0.000000e+00> : vector<8x128xf32>
    %11 = tpu.matmul %10, %2, %cst_8 {dimension_numbers = #tpu.dot_dimension_numbers<[1], [0], [0], [1], [0, 0, 1, 1], [], []>} : vector<8x128xf32>, vector<128x128xf32>, vector<8x128xf32> -> vector<8x128xf32>
    %cst_9 = arith.constant 0.000000e+00 : f32
    %12 = vector.broadcast %cst_9 : f32 to vector<8x128xf32>
    %13 = arith.maximumf %11, %12 : vector<8x128xf32>
    %cst_10 = arith.constant dense<0.000000e+00> : vector<8x128xf32>
    %14 = tpu.matmul %13, %3, %cst_10 {dimension_numbers = #tpu.dot_dimension_numbers<[1], [0], [0], [1], [0, 0, 1, 1], [], []>} : vector<8x128xf32>, vector<128x128xf32>, vector<8x128xf32> -> vector<8x128xf32>
    %cst_11 = arith.constant 0.000000e+00 : f32
    %15 = vector.broadcast %cst_11 : f32 to vector<8x128xf32>
    %16 = arith.maximumf %14, %15 : vector<8x128xf32>
    %cst_12 = arith.constant dense<0.000000e+00> : vector<8x128xf32>
    %17 = tpu.matmul %16, %4, %cst_12 {dimension_numbers = #tpu.dot_dimension_numbers<[1], [0], [0], [1], [0, 0, 1, 1], [], []>} : vector<8x128xf32>, vector<128x128xf32>, vector<8x128xf32> -> vector<8x128xf32>
    %c0_13 = arith.constant 0 : index
    %c0_14 = arith.constant 0 : index
    %18 = vector.load %arg3[%c0_13, %c0_14] : memref<8x128xf32, #tpu.memory_space<vmem>>, vector<8x128xf32>
    tpu.vector_store %arg3[%c0_13, %c0_14], %17 {strides = array<i32>} : memref<8x128xf32, #tpu.memory_space<vmem>>, vector<8x128xf32>,
    return
  }
  func.func @transform_0(%arg0: i32) -> (i32, i32) {
    %c0_i32 = arith.constant 0 : i32
    %c0_i32_0 = arith.constant 0 : i32
    return %arg0, %c0_i32 : i32, i32
  }
  func.func @transform_1(%arg0: i32) -> (i32, i32) {
    %c0_i32 = arith.constant 0 : i32
    %c0_i32_0 = arith.constant 0 : i32
    %c0_i32_1 = arith.constant 0 : i32
    return %c0_i32, %c0_i32_0 : i32, i32
  }
  func.func @transform_2(%arg0: i32) -> (i32, i32) {
    %c0_i32 = arith.constant 0 : i32
    %c0_i32_0 = arith.constant 0 : i32
    return %arg0, %c0_i32 : i32, i32
  }
}

</mosaic_0001>

<llo_original>
// kernel: tpu_custom_call.1
$region0: #{tpu_custom_call.1}
  #allocation0 [shape = 'u32[]', space=smem, size = 0x4, offset = 0x4, fixed_abs, tag = 'smem constant byte address 0x4 - core index']
  #allocation1 [shape = 'u32[144,128]{1,0:T(1,128)}', space=vmem, size = 0x12000, scoped, tag = 'internal scratch']
  %s0 = inlined_call_operand.hbm [shape: f32[8,32], index: 0, kind: input, shape index: {}]
  %s1 = inlined_call_operand.hbm [shape: f32[520,128], index: 1, kind: input, shape index: {}]
  %s2 = inlined_call_operand.hbm [shape: f32[8,128], index: 2, kind: output, shape index: {}]
  %s3 = sld [smem:[#allocation0]]
  $region26: #{tpu_custom_call.1} parent=0
    _
  %s5 = ssub.s32 1, %s3
  %s6 = scalar_select 0, %s5, %s3
  $region1: #{tpu_custom_call.1} parent=0
    #allocation2 [shape = 'u8[4096]{0}', space=vmem, size = 0x1000, scoped, tag = 'input window, operand 0, single buffered']
    #allocation3 [shape = 's32[1]{0}', space=sflag, size = 0x4, scoped, tag = 'scoped memory for tpu_custom_call.1']
    #allocation4 [shape = 's32[1]{0}', space=sflag, size = 0x4, scoped, tag = 'scoped memory for tpu_custom_call.1']
    #allocation5 [shape = 'u8[266240]{0}', space=vmem, size = 0x41000, scoped, tag = 'input window, operand 1, single buffered']
    #allocation6 [shape = 's32[1]{0}', space=sflag, size = 0x4, scoped, tag = 'scoped memory for tpu_custom_call.1']
    #allocation7 [shape = 'u8[4096]{0}', space=vmem, size = 0x1000, scoped, tag = 'output window, operand 0, single buffered']
    %7 = vsyncpa [#allocation3], 0
    %8 = vsyncpa [#allocation6], 0
    %9 = vsyncpa [#allocation4], 0
    // Predicated region
    $region2: #{tpu_custom_call.1} parent=1 // pred_check
      _
    $region3: #{tpu_custom_call.1} parent=1 // pred_check_branch
      %11 = sbr.rel (0) target = $region5
    $region4: #{tpu_custom_call.1} parent=1 // pred_region
      %s13 = ssub.s32 128, 128
      %14 = vsyncadd [#allocation3], %s13
      %s16 = sshll.u32 [#allocation2], 4
      %s17 = int_to_ptr.vmem [resolvable:$true] %s16
      %19 = dma.hbm_to_vmem [thread:$0]  %s0, 128, %s17, [#allocation3]
    $region5: #{tpu_custom_call.1} parent=1 // pred_fallthru
      _
    // Predicated region
    $region6: #{tpu_custom_call.1} parent=1 // pred_check
      _
    $region7: #{tpu_custom_call.1} parent=1 // pred_check_branch
      %21 = sbr.rel (0) target = $region9
    $region8: #{tpu_custom_call.1} parent=1 // pred_region
      %s23 = ssub.s32 8320, 8320
      %24 = vsyncadd [#allocation6], %s23
      %s25 = sshll.u32 [#allocation5], 4
      %s26 = int_to_ptr.vmem [resolvable:$true] %s25
      %31 = dma.hbm_to_vmem [thread:$0]  %s1, 8320, %s26, [#allocation6], 128, 128, 8
    $region9: #{tpu_custom_call.1} parent=1 // pred_fallthru
      _
    // Predicated region
    $region10: #{tpu_custom_call.1} parent=1 // pred_check
      _
    $region11: #{tpu_custom_call.1} parent=1 // pred_check_branch
      %33 = sbr.rel (0) target = $region13
    $region12: #{tpu_custom_call.1} parent=1 // pred_region
      %34 = dma.done [#allocation3], 128
    $region13: #{tpu_custom_call.1} parent=1 // pred_fallthru
      _
    // Predicated region
    $region14: #{tpu_custom_call.1} parent=1 // pred_check
      _
    $region15: #{tpu_custom_call.1} parent=1 // pred_check_branch
      %36 = sbr.rel (0) target = $region17
    $region16: #{tpu_custom_call.1} parent=1 // pred_region
      %37 = dma.done [#allocation6], 8320
    $region17: #{tpu_custom_call.1} parent=1 // pred_fallthru
      _
    %v38 = vld [vmem:[#allocation2] sm:$0xff]
    %v39 = vld [vmem:[#allocation5] sm:$0xff]
    %v40 = vld [vmem:[#allocation5 + $0x8] sm:$0xff]
    %v41 = vld [vmem:[#allocation5 + $0x10] sm:$0xff]
    %v42 = vld [vmem:[#allocation5 + $0x18] sm:$0xff]
    %v43 = vld [vmem:[#allocation5 + $0x80] sm:$0xff]
    %v44 = vld [vmem:[#allocation5 + $0x88] sm:$0xff]
    %v45 = vld [vmem:[#allocation5 + $0x90] sm:$0xff]
    %v46 = vld [vmem:[#allocation5 + $0x98] sm:$0xff]
    %v47 = vld [vmem:[#allocation5 + $0xa0] sm:$0xff]
    %v48 = vld [vmem:[#allocation5 + $0xa8] sm:$0xff]
    %v49 = vld [vmem:[#allocation5 + $0xb0] sm:$0xff]
    %v50 = vld [vmem:[#allocation5 + $0xb8] sm:$0xff]
    %v51 = vld [vmem:[#allocation5 + $0xc0] sm:$0xff]
    %v52 = vld [vmem:[#allocation5 + $0xc8] sm:$0xff]
    %v53 = vld [vmem:[#allocation5 + $0xd0] sm:$0xff]
    %v54 = vld [vmem:[#allocation5 + $0xd8] sm:$0xff]
    %v55 = vld [vmem:[#allocation5 + $0xe0] sm:$0xff]
    %v56 = vld [vmem:[#allocation5 + $0xe8] sm:$0xff]
    %v57 = vld [vmem:[#allocation5 + $0xf0] sm:$0xff]
    %v58 = vld [vmem:[#allocation5 + $0xf8] sm:$0xff]
    %v59 = vld [vmem:[#allocation5 + $0x100] sm:$0xff]
    %v60 = vld [vmem:[#allocation5 + $0x108] sm:$0xff]
    %v61 = vld [vmem:[#allocation5 + $0x110] sm:$0xff]
    %v62 = vld [vmem:[#allocation5 + $0x118] sm:$0xff]
    %v63 = vld [vmem:[#allocation5 + $0x120] sm:$0xff]
    %v64 = vld [vmem:[#allocation5 + $0x128] sm:$0xff]
    %v65 = vld [vmem:[#allocation5 + $0x130] sm:$0xff]
    %v66 = vld [vmem:[#allocation5 + $0x138] sm:$0xff]
    %v67 = vld [vmem:[#allocation5 + $0x140] sm:$0xff]
    %v68 = vld [vmem:[#allocation5 + $0x148] sm:$0xff]
    %v69 = vld [vmem:[#allocation5 + $0x150] sm:$0xff]
    %v70 = vld [vmem:[#allocation5 + $0x158] sm:$0xff]
    %v71 = vld [vmem:[#allocation5 + $0x160] sm:$0xff]
    %v72 = vld [vmem:[#allocation5 + $0x168] sm:$0xff]
    %v73 = vld [vmem:[#allocation5 + $0x170] sm:$0xff]
    %v74 = vld [vmem:[#allocation5 + $0x178] sm:$0xff]
    %v75 = vld [vmem:[#allocation5 + $0x180] sm:$0xff]
    %v76 = vld [vmem:[#allocation5 + $0x188] sm:$0xff]
    %v77 = vld [vmem:[#allocation5 + $0x190] sm:$0xff]
    %v78 = vld [vmem:[#allocation5 + $0x198] sm:$0xff]
    %v79 = vld [vmem:[#allocation5 + $0x1a0] sm:$0xff]
    %v80 = vld [vmem:[#allocation5 + $0x1a8] sm:$0xff]
    %v81 = vld [vmem:[#allocation5 + $0x1b0] sm:$0xff]
    %v82 = vld [vmem:[#allocation5 + $0x1b8] sm:$0xff]
    %v83 = vld [vmem:[#allocation5 + $0x1c0] sm:$0xff]
    %v84 = vld [vmem:[#allocation5 + $0x1c8] sm:$0xff]
    %v85 = vld [vmem:[#allocation5 + $0x1d0] sm:$0xff]
    %v86 = vld [vmem:[#allocation5 + $0x1d8] sm:$0xff]
    %v87 = vld [vmem:[#allocation5 + $0x1e0] sm:$0xff]
    %v88 = vld [vmem:[#allocation5 + $0x1e8] sm:$0xff]
    %v89 = vld [vmem:[#allocation5 + $0x1f0] sm:$0xff]
    %v90 = vld [vmem:[#allocation5 + $0x1f8] sm:$0xff]
    %v91 = vld [vmem:[#allocation5 + $0x200] sm:$0x1]
    %v92 = vlaneseq
    %v93 = vshrl.u32 %v92, 7
    %v94 = vsub.s32 0, %v93
    %v95 = vrot.slane %v91, %v94
    %vm96 = vcmask 261120
    %v98 = vsel %vm96, %v38, 0
    %100 = vmatprep.subr.mxu0 0.0
    %101 = vmatpush1.msra.mxu0 %v39
    %102 = vmatprep.subr.mxu0 0.0
    %103 = vmatpush1.msra.mxu0 %v40
    %104 = vmatprep.subr.mxu0 0.0
    %105 = vmatpush1.msra.mxu0 %v41
    %106 = vmatprep.subr.mxu0 0.0
    %107 = vmatpush1.msra.mxu0 %v42
    %108 = vmatprep.subr.mxu0 0.0
    %109 = vmatpush1.msra.mxu0 0.0
    %110 = vmatprep.subr.mxu0 0.0
    %111 = vmatpush1.msra.mxu0 0.0
    %112 = vmatprep.subr.mxu0 0.0
    %113 = vmatpush1.msra.mxu0 0.0
    %114 = vmatprep.subr.mxu0 0.0
    %115 = vmatpush1.msra.mxu0 0.0
    %116 = vmatprep.subr.mxu0 0.0
    %117 = vmatpush1.msra.mxu0 0.0
    %118 = vmatprep.subr.mxu0 0.0
    %119 = vmatpush1.msra.mxu0 0.0
    %120 = vmatprep.subr.mxu0 0.0
    %121 = vmatpush1.msra.mxu0 0.0
    %122 = vmatprep.subr.mxu0 0.0
    %123 = vmatpush1.msra.mxu0 0.0
    %124 = vmatprep.subr.mxu0 0.0
    %125 = vmatpush1.msra.mxu0 0.0
    %126 = vmatprep.subr.mxu0 0.0
    %127 = vmatpush1.msra.mxu0 0.0
    %128 = vmatprep.subr.mxu0 0.0
    %129 = vmatpush1.msra.mxu0 0.0
    %130 = vmatprep.subr.mxu0 0.0
    %131 = vmatpush1.msra.mxu0 0.0
    %132 = vmatprep.subr.mxu0 0.0
    %133 = vmatpush1.msra.mxu0 0.0
    %134 = vmatprep.subr.mxu0 0.0
    %135 = vmatpush1.msra.mxu0 0.0
    %136 = vmatprep.subr.mxu0 0.0
    %137 = vmatpush1.msra.mxu0 0.0
    %138 = vmatprep.subr.mxu0 0.0
    %139 = vmatpush1.msra.mxu0 0.0
    %140 = vmatprep.subr.mxu0 0.0
    %141 = vmatpush1.msra.mxu0 0.0
    %142 = vmatprep.subr.mxu0 0.0
    %143 = vmatpush1.msra.mxu0 0.0
    %144 = vmatprep.subr.mxu0 0.0
    %145 = vmatpush1.msra.mxu0 0.0
    %146 = vmatprep.subr.mxu0 0.0
    %147 = vmatpush1.msra.mxu0 0.0
    %148 = vmatprep.subr.mxu0 0.0
    %149 = vmatpush1.msra.mxu0 0.0
    %150 = vmatprep.subr.mxu0 0.0
    %151 = vmatpush1.msra.mxu0 0.0
    %152 = vmatprep.subr.mxu0 0.0
    %153 = vmatpush1.msra.mxu0 0.0
    %154 = vmatprep.subr.mxu0 0.0
    %155 = vmatpush1.msra.mxu0 0.0
    %156 = vmatprep.subr.mxu0 0.0
    %157 = vmatpush1.msra.mxu0 0.0
    %158 = vmatprep.subr.mxu0 0.0
    %159 = vmatpush1.msra.mxu0 0.0
    %160 = vmatprep.subr.mxu0 0.0
    %161 = vmatpush1.msra.mxu0 0.0
    %162 = vmatprep.subr.mxu0 0.0
    %163 = vmatpush1.msra.mxu0 0.0
    %164 = vmatprep.mubr.f32.mxu0 0.0
    %165 = vmatmul.mubr.f32.gmra.mrb[0].mxu0 %v98
    %v166 = vpop.f32.mrb[0].mxu0
    %v167 = vadd.f32 %v95, %v166
    %v168 = vpop.f32.mrb[0].mxu0
    %169 = vdwg.mxu0
    %v170 = vmax.f32 %v167, 0.0
    %171 = vmatprep.subr.mxu0 0.0
    %172 = vmatpush1.msra.mxu0 %v43
    %173 = vmatprep.subr.mxu0 0.0
    %174 = vmatpush1.msra.mxu0 %v44
    %175 = vmatprep.subr.mxu0 0.0
    %176 = vmatpush1.msra.mxu0 %v45
    %177 = vmatprep.subr.mxu0 0.0
    %178 = vmatpush1.msra.mxu0 %v46
    %179 = vmatprep.subr.mxu0 0.0
    %180 = vmatpush1.msra.mxu0 %v47
    %181 = vmatprep.subr.mxu0 0.0
    %182 = vmatpush1.msra.mxu0 %v48
    %183 = vmatprep.subr.mxu0 0.0
    %184 = vmatpush1.msra.mxu0 %v49
    %185 = vmatprep.subr.mxu0 0.0
    %186 = vmatpush1.msra.mxu0 %v50
    %187 = vmatprep.subr.mxu0 0.0
    %188 = vmatpush1.msra.mxu0 %v51
    %189 = vmatprep.subr.mxu0 0.0
    %190 = vmatpush1.msra.mxu0 %v52
    %191 = vmatprep.subr.mxu0 0.0
    %192 = vmatpush1.msra.mxu0 %v53
    %193 = vmatprep.subr.mxu0 0.0
    %194 = vmatpush1.msra.mxu0 %v54
    %195 = vmatprep.subr.mxu0 0.0
    %196 = vmatpush1.msra.mxu0 %v55
    %197 = vmatprep.subr.mxu0 0.0
    %198 = vmatpush1.msra.mxu0 %v56
    %199 = vmatprep.subr.mxu0 0.0
    %200 = vmatpush1.msra.mxu0 %v57
    %201 = vmatprep.subr.mxu0 0.0
    %202 = vmatpush1.msra.mxu0 %v58
    %203 = vmatprep.subr.mxu0 0.0
    %204 = vmatpush1.msra.mxu0 0.0
    %205 = vmatprep.subr.mxu0 0.0
    %206 = vmatpush1.msra.mxu0 0.0
    %207 = vmatprep.subr.mxu0 0.0
    %208 = vmatpush1.msra.mxu0 0.0
    %209 = vmatprep.subr.mxu0 0.0
    %210 = vmatpush1.msra.mxu0 0.0
    %211 = vmatprep.subr.mxu0 0.0
    %212 = vmatpush1.msra.mxu0 0.0
    %213 = vmatprep.subr.mxu0 0.0
    %214 = vmatpush1.msra.mxu0 0.0
    %215 = vmatprep.subr.mxu0 0.0
    %216 = vmatpush1.msra.mxu0 0.0
    %217 = vmatprep.subr.mxu0 0.0
    %218 = vmatpush1.msra.mxu0 0.0
    %219 = vmatprep.subr.mxu0 0.0
    %220 = vmatpush1.msra.mxu0 0.0
    %221 = vmatprep.subr.mxu0 0.0
    %222 = vmatpush1.msra.mxu0 0.0
    %223 = vmatprep.subr.mxu0 0.0
    %224 = vmatpush1.msra.mxu0 0.0
    %225 = vmatprep.subr.mxu0 0.0
    %226 = vmatpush1.msra.mxu0 0.0
    %227 = vmatprep.subr.mxu0 0.0
    %228 = vmatpush1.msra.mxu0 0.0
    %229 = vmatprep.subr.mxu0 0.0
    %230 = vmatpush1.msra.mxu0 0.0
    %231 = vmatprep.subr.mxu0 0.0
    %232 = vmatpush1.msra.mxu0 0.0
    %233 = vmatprep.subr.mxu0 0.0
    %234 = vmatpush1.msra.mxu0 0.0
    %235 = vmatprep.mubr.f32.mxu0 0.0
    %236 = vmatmul.mubr.f32.gmra.mrb[0].mxu0 %v170
    %v237 = vpop.f32.mrb[0].mxu0
    %v238 = vadd.f32 0.0, %v237
    %v239 = vpop.f32.mrb[0].mxu0
    %240 = vdwg.mxu0
    %v241 = vmax.f32 %v238, 0.0
    %242 = vmatprep.subr.mxu0 0.0
    %243 = vmatpush1.msra.mxu0 %v59
    %244 = vmatprep.subr.mxu0 0.0
    %245 = vmatpush1.msra.mxu0 %v60
    %246 = vmatprep.subr.mxu0 0.0
    %247 = vmatpush1.msra.mxu0 %v61
    %248 = vmatprep.subr.mxu0 0.0
    %249 = vmatpush1.msra.mxu0 %v62
    %250 = vmatprep.subr.mxu0 0.0
    %251 = vmatpush1.msra.mxu0 %v63
    %252 = vmatprep.subr.mxu0 0.0
    %253 = vmatpush1.msra.mxu0 %v64
    %254 = vmatprep.subr.mxu0 0.0
    %255 = vmatpush1.msra.mxu0 %v65
    %256 = vmatprep.subr.mxu0 0.0
    %257 = vmatpush1.msra.mxu0 %v66
    %258 = vmatprep.subr.mxu0 0.0
    %259 = vmatpush1.msra.mxu0 %v67
    %260 = vmatprep.subr.mxu0 0.0
    %261 = vmatpush1.msra.mxu0 %v68
    %262 = vmatprep.subr.mxu0 0.0
    %263 = vmatpush1.msra.mxu0 %v69
    %264 = vmatprep.subr.mxu0 0.0
    %265 = vmatpush1.msra.mxu0 %v70
    %266 = vmatprep.subr.mxu0 0.0
    %267 = vmatpush1.msra.mxu0 %v71
    %268 = vmatprep.subr.mxu0 0.0
    %269 = vmatpush1.msra.mxu0 %v72
    %270 = vmatprep.subr.mxu0 0.0
    %271 = vmatpush1.msra.mxu0 %v73
    %272 = vmatprep.subr.mxu0 0.0
    %273 = vmatpush1.msra.mxu0 %v74
    %274 = vmatprep.subr.mxu0 0.0
    %275 = vmatpush1.msra.mxu0 0.0
    %276 = vmatprep.subr.mxu0 0.0
    %277 = vmatpush1.msra.mxu0 0.0
    %278 = vmatprep.subr.mxu0 0.0
    %279 = vmatpush1.msra.mxu0 0.0
    %280 = vmatprep.subr.mxu0 0.0
    %281 = vmatpush1.msra.mxu0 0.0
    %282 = vmatprep.subr.mxu0 0.0
    %283 = vmatpush1.msra.mxu0 0.0
    %284 = vmatprep.subr.mxu0 0.0
    %285 = vmatpush1.msra.mxu0 0.0
    %286 = vmatprep.subr.mxu0 0.0
    %287 = vmatpush1.msra.mxu0 0.0
    %288 = vmatprep.subr.mxu0 0.0
    %289 = vmatpush1.msra.mxu0 0.0
    %290 = vmatprep.subr.mxu0 0.0
    %291 = vmatpush1.msra.mxu0 0.0
    %292 = vmatprep.subr.mxu0 0.0
    %293 = vmatpush1.msra.mxu0 0.0
    %294 = vmatprep.subr.mxu0 0.0
    %295 = vmatpush1.msra.mxu0 0.0
    %296 = vmatprep.subr.mxu0 0.0
    %297 = vmatpush1.msra.mxu0 0.0
    %298 = vmatprep.subr.mxu0 0.0
    %299 = vmatpush1.msra.mxu0 0.0
    %300 = vmatprep.subr.mxu0 0.0
    %301 = vmatpush1.msra.mxu0 0.0
    %302 = vmatprep.subr.mxu0 0.0
    %303 = vmatpush1.msra.mxu0 0.0
    %304 = vmatprep.subr.mxu0 0.0
    %305 = vmatpush1.msra.mxu0 0.0
    %306 = vmatprep.mubr.f32.mxu0 0.0
    %307 = vmatmul.mubr.f32.gmra.mrb[0].mxu0 %v241
    %v308 = vpop.f32.mrb[0].mxu0
    %v309 = vadd.f32 0.0, %v308
    %v310 = vpop.f32.mrb[0].mxu0
    %311 = vdwg.mxu0
    %v312 = vmax.f32 %v309, 0.0
    %313 = vmatprep.subr.mxu0 0.0
    %314 = vmatpush1.msra.mxu0 %v75
    %315 = vmatprep.subr.mxu0 0.0
    %316 = vmatpush1.msra.mxu0 %v76
    %317 = vmatprep.subr.mxu0 0.0
    %318 = vmatpush1.msra.mxu0 %v77
    %319 = vmatprep.subr.mxu0 0.0
    %320 = vmatpush1.msra.mxu0 %v78
    %321 = vmatprep.subr.mxu0 0.0
    %322 = vmatpush1.msra.mxu0 %v79
    %323 = vmatprep.subr.mxu0 0.0
    %324 = vmatpush1.msra.mxu0 %v80
    %325 = vmatprep.subr.mxu0 0.0
    %326 = vmatpush1.msra.mxu0 %v81
    %327 = vmatprep.subr.mxu0 0.0
    %328 = vmatpush1.msra.mxu0 %v82
    %329 = vmatprep.subr.mxu0 0.0
    %330 = vmatpush1.msra.mxu0 %v83
    %331 = vmatprep.subr.mxu0 0.0
    %332 = vmatpush1.msra.mxu0 %v84
    %333 = vmatprep.subr.mxu0 0.0
    %334 = vmatpush1.msra.mxu0 %v85
    %335 = vmatprep.subr.mxu0 0.0
    %336 = vmatpush1.msra.mxu0 %v86
    %337 = vmatprep.subr.mxu0 0.0
    %338 = vmatpush1.msra.mxu0 %v87
    %339 = vmatprep.subr.mxu0 0.0
    %340 = vmatpush1.msra.mxu0 %v88
    %341 = vmatprep.subr.mxu0 0.0
    %342 = vmatpush1.msra.mxu0 %v89
    %343 = vmatprep.subr.mxu0 0.0
    %344 = vmatpush1.msra.mxu0 %v90
    %345 = vmatprep.subr.mxu0 0.0
    %346 = vmatpush1.msra.mxu0 0.0
    %347 = vmatprep.subr.mxu0 0.0
    %348 = vmatpush1.msra.mxu0 0.0
    %349 = vmatprep.subr.mxu0 0.0
    %350 = vmatpush1.msra.mxu0 0.0
    %351 = vmatprep.subr.mxu0 0.0
    %352 = vmatpush1.msra.mxu0 0.0
    %353 = vmatprep.subr.mxu0 0.0
    %354 = vmatpush1.msra.mxu0 0.0
    %355 = vmatprep.subr.mxu0 0.0
    %356 = vmatpush1.msra.mxu0 0.0
    %357 = vmatprep.subr.mxu0 0.0
    %358 = vmatpush1.msra.mxu0 0.0
    %359 = vmatprep.subr.mxu0 0.0
    %360 = vmatpush1.msra.mxu0 0.0
    %361 = vmatprep.subr.mxu0 0.0
    %362 = vmatpush1.msra.mxu0 0.0
    %363 = vmatprep.subr.mxu0 0.0
    %364 = vmatpush1.msra.mxu0 0.0
    %365 = vmatprep.subr.mxu0 0.0
    %366 = vmatpush1.msra.mxu0 0.0
    %367 = vmatprep.subr.mxu0 0.0
    %368 = vmatpush1.msra.mxu0 0.0
    %369 = vmatprep.subr.mxu0 0.0
    %370 = vmatpush1.msra.mxu0 0.0
    %371 = vmatprep.subr.mxu0 0.0
    %372 = vmatpush1.msra.mxu0 0.0
    %373 = vmatprep.subr.mxu0 0.0
    %374 = vmatpush1.msra.mxu0 0.0
    %375 = vmatprep.subr.mxu0 0.0
    %376 = vmatpush1.msra.mxu0 0.0
    %377 = vmatprep.mubr.f32.mxu0 0.0
    %378 = vmatmul.mubr.f32.gmra.mrb[0].mxu0 %v312
    %v379 = vpop.f32.mrb[0].mxu0
    %v380 = vadd.f32 0.0, %v379
    %v381 = vpop.f32.mrb[0].mxu0
    %382 = vdwg.mxu0
    %383 = vst [vmem:[#allocation7] sm:$0xff] %v380
    // Predicated region
    $region18: #{tpu_custom_call.1} parent=1 // pred_check
      _
    $region19: #{tpu_custom_call.1} parent=1 // pred_check_branch
      %385 = sbr.rel (0) target = $region21
    $region20: #{tpu_custom_call.1} parent=1 // pred_region
      %s387 = ssub.s32 128, 128
      %388 = vsyncadd [#allocation4], %s387
      %s390 = sshll.u32 [#allocation7], 4
      %s391 = int_to_ptr.vmem [resolvable:$true] %s390
      %393 = dma.vmem_to_hbm [thread:$0]  %s391, 128, %s2, [#allocation4]
    $region21: #{tpu_custom_call.1} parent=1 // pred_fallthru
      _
    // Predicated region
    $region22: #{tpu_custom_call.1} parent=1 // pred_check
      _
    $region23: #{tpu_custom_call.1} parent=1 // pred_check_branch
      %395 = sbr.rel (0) target = $region25
    $region24: #{tpu_custom_call.1} parent=1 // pred_region
      %396 = dma.done [#allocation4], 128
    $region25: #{tpu_custom_call.1} parent=1 // pred_fallthru
      _
    %397 = vsyncpa [#allocation3], 1
    %398 = vsyncpa [#allocation6], 1
    %399 = vsyncpa [#allocation4], 1

</llo_original>
